<compile_context>
chip_gen: v7x
topology: tpu7x:2x2x1
jax: 0.10.0
libtpu: 0.0.40
codegen_flags: <defaults>
</compile_context>

<pallas_src>
import math
from functools import partial

import jax
import jax.numpy as jnp
from jax.experimental import pallas as pl
from jax.experimental.pallas import tpu as pltpu


def _round_up(v, m):
    return ((v + m - 1) // m) * m


# ----------------------------- Pallas kernel ------------------------------ #

def _mode_mix_kernel(w_ref, x_ref, o_ref):
    # One grid step == one R tile.
    #   w_ref : (2*K*O, 2*K*I)  resident block-diagonal complex weights
    #   x_ref : (2*K*I, r_tile) [real ; imag] activations, R on the lane axis
    #   o_ref : (2*K*O, r_tile) [real ; imag] outputs,     R on the lane axis
    o_ref[...] = jnp.dot(w_ref[...], x_ref[...],
                         preferred_element_type=jnp.float32)


def mode_mix(w_stack, x_stack, r_tile):
    """Out = W_stack @ X_stack, tiled over the lane (R) axis."""
    WO, WI = w_stack.shape
    WI2, r_pad = x_stack.shape
    assert WI == WI2 and r_pad % r_tile == 0
    grid = (r_pad // r_tile,)
    return pl.pallas_call(
        _mode_mix_kernel,
        out_shape=jax.ShapeDtypeStruct((WO, r_pad), jnp.float32),
        grid_spec=pltpu.PrefetchScalarGridSpec(
            num_scalar_prefetch=0,
            grid=grid,
            in_specs=[
                # Weights: full array, constant block index -> VMEM-resident.
                pl.BlockSpec((WO, WI), lambda r: (0, 0)),
                # Activations: stream R tiles (lane-dense).
                pl.BlockSpec((WI, r_tile), lambda r: (0, r)),
            ],
            out_specs=pl.BlockSpec((WO, r_tile), lambda r: (0, r)),
        ),
        compiler_params=pltpu.CompilerParams(
            dimension_semantics=("parallel",)),
    )(w_stack, x_stack)


# ------------------------------ Module glue ------------------------------- #

@partial(jax.jit, static_argnames=("modes_x", "modes_y"))
def spectral_conv2d(x, w_x, w_y, modes_x, modes_y):
    """Forward pass of SpectralConv2d.

    x   : (B, I, M, N) float32  (NCHW, same as PyTorch)
    w_x : (I, O, modes_x, 2) float32  (fourier_weight[0])
    w_y : (I, O, modes_y, 2) float32  (fourier_weight[1])
    """
    B, I, M, N = x.shape
    O = w_y.shape[1]
    Ky, Kx = modes_y, modes_x
    K = Ky + Kx

    # ---- FFTs (plain JAX, no Pallas TPU primitive) ----
    x_fty = jnp.fft.rfft(x, axis=-1, norm='ortho')     # (B, I, M, N//2+1) c64
    x_ftx = jnp.fft.rfft(x, axis=-2, norm='ortho')     # (B, I, M//2+1, N) c64

    xy_m = x_fty[..., :Ky]                             # (B, I, M, Ky)
    xx_m = x_ftx[:, :, :Kx, :]                         # (B, I, Kx, N)

    # Mode-major, channels on sublanes, B*spatial on lanes.
    xy_t = jnp.transpose(xy_m, (3, 1, 0, 2)).reshape(Ky * I, B * M)
    xx_t = jnp.transpose(xx_m, (2, 1, 0, 3)).reshape(Kx * I, B * N)

    Ry, Rx = B * M, B * N
    R = max(Ry, Rx)
    # Lane tile: multiple of 128, capped so the double-buffered working set is
    # small even on v7x's 64 MiB VMEM.
    r_tile = min(1024, _round_up(R, 128))
    r_pad = _round_up(R, r_tile)

    # Stacked activations: [real ; imag], zero-padded columns beyond each
    # branch's own R (padding multiplies to zero and is sliced off below).
    xr = jnp.zeros((K * I, r_pad), jnp.float32)
    xi = jnp.zeros((K * I, r_pad), jnp.float32)
    xr = xr.at[:Ky * I, :Ry].set(jnp.real(xy_t)).at[Ky * I:, :Rx].set(jnp.real(xx_t))
    xi = xi.at[:Ky * I, :Ry].set(jnp.imag(xy_t)).at[Ky * I:, :Rx].set(jnp.imag(xx_t))
    x_stack = jnp.concatenate([xr, xi], axis=0)        # (2*K*I, r_pad)

    # Per-mode (O, I) blocks taken straight from w[..., 0] / w[..., 1]
    # (no complex64 intermediates).
    wyr = jnp.transpose(w_y[..., 0], (2, 1, 0))        # (Ky, O, I)
    wyi = jnp.transpose(w_y[..., 1], (2, 1, 0))
    wxr = jnp.transpose(w_x[..., 0], (2, 1, 0))        # (Kx, O, I)
    wxi = jnp.transpose(w_x[..., 1], (2, 1, 0))
    wr = jnp.concatenate([wyr, wxr], axis=0)           # (K, O, I)
    wi = jnp.concatenate([wyi, wxi], axis=0)

    eye = jnp.eye(K, dtype=jnp.float32)
    wr_bd = (wr[:, :, None, :] * eye[:, None, :, None]).reshape(K * O, K * I)
    wi_bd = (wi[:, :, None, :] * eye[:, None, :, None]).reshape(K * O, K * I)
    w_stack = jnp.concatenate(
        [jnp.concatenate([wr_bd, -wi_bd], axis=1),
         jnp.concatenate([wi_bd, wr_bd], axis=1)], axis=0)   # (2*K*O, 2*K*I)

    # ---- single Pallas call for both branches, all modes ----
    out = mode_mix(w_stack, x_stack, r_tile)           # (2*K*O, r_pad)
    o_r, o_i = out[:K * O], out[K * O:]

    # ---- y branch: scatter into rfft layout and invert ----
    oy = (o_r[:Ky * O, :Ry] + 1j * o_i[:Ky * O, :Ry]).reshape(Ky, O, B, M)
    oy = jnp.transpose(oy, (2, 1, 3, 0))               # (B, O, M, Ky)
    out_ft = jnp.zeros((B, O, M, N // 2 + 1), jnp.complex64)
    out_ft = out_ft.at[..., :Ky].set(oy)
    xy = jnp.fft.irfft(out_ft, n=N, axis=-1, norm='ortho')   # (B, O, M, N)

    # ---- x branch ----
    ox = (o_r[Ky * O:, :Rx] + 1j * o_i[Ky * O:, :Rx]).reshape(Kx, O, B, N)
    ox = jnp.transpose(ox, (2, 1, 0, 3))               # (B, O, Kx, N)
    out_ft = jnp.zeros((B, O, M // 2 + 1, N), jnp.complex64)
    out_ft = out_ft.at[:, :, :Kx, :].set(ox)
    xx = jnp.fft.irfft(out_ft, n=M, axis=-2, norm='ortho')   # (B, O, M, N)

    return xx + xy


def spectral_conv2d_reference(x, w_x, w_y, modes_x, modes_y):
    """Pure-JAX reference replicating the PyTorch forward exactly."""
    B, I, M, N = x.shape
    O = w_y.shape[1]

    x_fty = jnp.fft.rfft(x, axis=-1, norm='ortho')
    wy_c = w_y[..., 0] + 1j * w_y[..., 1]
    out_ft = jnp.zeros((B, O, M, N // 2 + 1), jnp.complex64)
    out_ft = out_ft.at[..., :modes_y].set(
        jnp.einsum('bixy,ioy->boxy', x_fty[..., :modes_y], wy_c))
    xy = jnp.fft.irfft(out_ft, n=N, axis=-1, norm='ortho')

    x_ftx = jnp.fft.rfft(x, axis=-2, norm='ortho')
    wx_c = w_x[..., 0] + 1j * w_x[..., 1]
    out_ft = jnp.zeros((B, O, M // 2 + 1, N), jnp.complex64)
    out_ft = out_ft.at[:, :, :modes_x, :].set(
        jnp.einsum('bixy,iox->boxy', x_ftx[:, :, :modes_x, :], wx_c))
    xx = jnp.fft.irfft(out_ft, n=M, axis=-2, norm='ortho')

    return xx + xy


def xavier_normal(key, shape):
    # PyTorch xavier_normal_ for 4D (in, out, modes, 2):
    #   fan_in  = shape[1] * shape[2] * shape[3]
    #   fan_out = shape[0] * shape[2] * shape[3]
    fan_in = shape[1] * shape[2] * shape[3]
    fan_out = shape[0] * shape[2] * shape[3]
    std = math.sqrt(2.0 / (fan_in + fan_out))
    return std * jax.random.normal(key, shape, dtype=jnp.float32)


# --------------------------------- main ----------------------------------- #

if __name__ == "__main__":
    B, in_dim, out_dim = 2, 4, 4
    M = N = 16
    modes_x = modes_y = 8

    key = jax.random.PRNGKey(0)
    kx, kwx, kwy = jax.random.split(key, 3)

    x = jax.random.normal(kx, (B, in_dim, M, N), dtype=jnp.float32)
    w_x = xavier_normal(kwx, (in_dim, out_dim, modes_x, 2))   # fourier_weight[0]
    w_y = xavier_normal(kwy, (in_dim, out_dim, modes_y, 2))   # fourier_weight[1]

    out = spectral_conv2d(x, w_x, w_y, modes_x, modes_y)
    out = jax.block_until_ready(out)

    ref = spectral_conv2d_reference(x, w_x, w_y, modes_x, modes_y)
    ref = jax.block_until_ready(ref)

    assert out.shape == (B, out_dim, M, N), out.shape
    assert jnp.allclose(out, ref, atol=1e-4, rtol=1e-4), \
        float(jnp.max(jnp.abs(out - ref)))

    print("KERNEL_OK")
</pallas_src>

<mosaic_0001>
module attributes {stable_mosaic.version = 11 : i64} {
  func.func @_mode_mix_kernel(%arg0: i32, %arg1: memref<128x128xf32, #tpu.memory_space<vmem>>, %arg2: memref<128x128xf32, #tpu.memory_space<vmem>>, %arg3: memref<128x128xf32, #tpu.memory_space<vmem>>) attributes {dimension_semantics = [#tpu.dimension_semantics<parallel>], iteration_bounds = array<i64: 1>, scalar_prefetch = 0 : i64, scratch_operands = 0 : i64, tpu.core_type = #tpu.core_type<tc>, window_params = [{pipeline_mode = #tpu.pipeline_mode<synchronous>, transform_indices = @transform_0, window_bounds = array<i64: 128, 128>}, {transform_indices = @transform_1, window_bounds = array<i64: 128, 128>}, {transform_indices = @transform_2, window_bounds = array<i64: 128, 128>}]} {
    %c0 = arith.constant 0 : index
    %c0_0 = arith.constant 0 : index
    %0 = vector.load %arg1[%c0, %c0_0] : memref<128x128xf32, #tpu.memory_space<vmem>>, vector<128x128xf32>
    %c0_1 = arith.constant 0 : index
    %c0_2 = arith.constant 0 : index
    %1 = vector.load %arg2[%c0_1, %c0_2] : memref<128x128xf32, #tpu.memory_space<vmem>>, vector<128x128xf32>
    %cst = arith.constant dense<0.000000e+00> : vector<128x128xf32>
    %2 = tpu.matmul %0, %1, %cst {dimension_numbers = #tpu.dot_dimension_numbers<[1], [0], [0], [1], [0, 0, 1, 1], [], []>} : vector<128x128xf32>, vector<128x128xf32>, vector<128x128xf32> -> vector<128x128xf32>
    %c0_3 = arith.constant 0 : index
    %c0_4 = arith.constant 0 : index
    %3 = vector.load %arg3[%c0_3, %c0_4] : memref<128x128xf32, #tpu.memory_space<vmem>>, vector<128x128xf32>
    tpu.vector_store %arg3[%c0_3, %c0_4], %2 {strides = array<i32>} : memref<128x128xf32, #tpu.memory_space<vmem>>, vector<128x128xf32>,
    return
  }
  func.func @transform_0(%arg0: i32) -> (i32, i32) {
    %c0_i32 = arith.constant 0 : i32
    %c0_i32_0 = arith.constant 0 : i32
    %c0_i32_1 = arith.constant 0 : i32
    return %c0_i32, %c0_i32_0 : i32, i32
  }
  func.func @transform_1(%arg0: i32) -> (i32, i32) {
    %c0_i32 = arith.constant 0 : i32
    %c0_i32_0 = arith.constant 0 : i32
    return %c0_i32, %arg0 : i32, i32
  }
  func.func @transform_2(%arg0: i32) -> (i32, i32) {
    %c0_i32 = arith.constant 0 : i32
    %c0_i32_0 = arith.constant 0 : i32
    return %c0_i32, %arg0 : i32, i32
  }
}

</mosaic_0001>

<llo_original>
// kernel: neg.1
$region0: #{neg.1}
  #allocation0 [shape = 's32[1]{0}', space=sflag, size = 0x4, scoped, tag = 'scoped memory for neg.1']
  %s0 = inlined_call_operand.vmem [shape: f32[64,64], index: 0, kind: input, shape index: {}]
  %s1 = inlined_call_operand.vmem [shape: f32[64,64], index: 1, kind: output, shape index: {}]
  %v2 = vld [vmem:[%s0] sm:$0xff]
  %3 = xla_tuple %v2
  %4 = xla_tuple %3
  %v5 = vxor.u32 %v2, 2147483648
  %6 = xla_tuple %v5
  %7 = vst [vmem:[%s1] sm:$0xff] %v5
  %s8 = scalar_lea.vmem %s0, 8
  %v9 = vld [vmem:[%s8] sm:$0xff]
  %10 = xla_tuple %v9
  %11 = xla_tuple %10
  %v12 = vxor.u32 %v9, 2147483648
  %13 = xla_tuple %v12
  %s14 = scalar_lea.vmem %s1, 8
  %15 = vst [vmem:[%s14] sm:$0xff] %v12
  %s16 = scalar_lea.vmem %s0, 16
  %v17 = vld [vmem:[%s16] sm:$0xff]
  %18 = xla_tuple %v17
  %19 = xla_tuple %18
  %v20 = vxor.u32 %v17, 2147483648
  %21 = xla_tuple %v20
  %s22 = scalar_lea.vmem %s1, 16
  %23 = vst [vmem:[%s22] sm:$0xff] %v20
  %s24 = scalar_lea.vmem %s0, 24
  %v25 = vld [vmem:[%s24] sm:$0xff]
  %26 = xla_tuple %v25
  %27 = xla_tuple %26
  %v28 = vxor.u32 %v25, 2147483648
  %29 = xla_tuple %v28
  %s30 = scalar_lea.vmem %s1, 24
  %31 = vst [vmem:[%s30] sm:$0xff] %v28
  %s32 = scalar_lea.vmem %s0, 32
  %v33 = vld [vmem:[%s32] sm:$0xff]
  %34 = xla_tuple %v33
  %35 = xla_tuple %34
  %v36 = vxor.u32 %v33, 2147483648
  %37 = xla_tuple %v36
  %s38 = scalar_lea.vmem %s1, 32
  %39 = vst [vmem:[%s38] sm:$0xff] %v36
  %s40 = scalar_lea.vmem %s0, 40
  %v41 = vld [vmem:[%s40] sm:$0xff]
  %42 = xla_tuple %v41
  %43 = xla_tuple %42
  %v44 = vxor.u32 %v41, 2147483648
  %45 = xla_tuple %v44
  %s46 = scalar_lea.vmem %s1, 40
  %47 = vst [vmem:[%s46] sm:$0xff] %v44
  %s48 = scalar_lea.vmem %s0, 48
  %v49 = vld [vmem:[%s48] sm:$0xff]
  %50 = xla_tuple %v49
  %51 = xla_tuple %50
  %v52 = vxor.u32 %v49, 2147483648
  %53 = xla_tuple %v52
  %s54 = scalar_lea.vmem %s1, 48
  %55 = vst [vmem:[%s54] sm:$0xff] %v52
  %s56 = scalar_lea.vmem %s0, 56
  %v57 = vld [vmem:[%s56] sm:$0xff]
  %58 = xla_tuple %v57
  %59 = xla_tuple %58
  %v60 = vxor.u32 %v57, 2147483648
  %61 = xla_tuple %v60
  %s62 = scalar_lea.vmem %s1, 56
  %63 = vst [vmem:[%s62] sm:$0xff] %v60

// kernel: reverse.5
$region0: #{reverse.5}
  %s0 = inlined_call_operand.vmem [shape: f32[2,4,16,7], index: 0, kind: input, shape index: {}]
  %s1 = inlined_call_operand.vmem [shape: f32[2,4,16,7], index: 1, kind: output, shape index: {}]
  %v2 = vlaneseq
  %v3 = vsub.s32 6, %v2
  %4 = vset.pattern.permute.xlu0 %v3
  $region1: #{reverse.5} parent=0
    #allocation0 [shape = 'u8[65536]{0}', space=vmem, size = 0x10000, scoped, tag = 'operand span for operand 0']
    #allocation1 [shape = 'u8[65536]{0}', space=vmem, size = 0x10000, scoped, tag = 'operand span for operand 1']
    // Predicated region
    $region2: #{reverse.5} parent=1 // pred_check
      _
    $region3: #{reverse.5} parent=1 // pred_check_branch
      %6 = sbr.rel (0) target = $region5
    $region4: #{reverse.5} parent=1 // pred_region
      // Predicated region
      $region6: #{reverse.5} parent=4 // pred_check
        _
      $region7: #{reverse.5} parent=4 // pred_check_branch
        %8 = sbr.rel (0) target = $region9
      $region8: #{reverse.5} parent=4 // pred_region
        // Predicated region
        $region21: #{reverse.5} parent=8 // pred_check
          _
        $region22: #{reverse.5} parent=8 // pred_check_branch
          %53 = sbr.rel (0) target = $region24
        $region23: #{reverse.5} parent=8 // pred_region
          loop: start=0, step=1, limit=1
          $region25: #{reverse.5} parent=23 // loop_pre_header
            _
          $region26: #{reverse.5} parent=23 // loop_header
            %s55 = sphi 0, %s59
            %p56 = scmp.ge.s32.totalorder %s55, 1
            %s60 = sphi %s0, %s0
            %s61 = sphi [#allocation0], [#allocation0]
          $region27: #{reverse.5} parent=23 // loop_header_branch
            %58 = sbr.rel (%p56) target = $region31
          $region28: #{reverse.5} parent=23 // loop_body
            %v62 = vld [vmem:[%s60] sm:$0xff]
            %63 = vst [vmem:[%s61] sm:$0xff] %v62
            %v64 = vld [vmem:[%s60 + $0x8] sm:$0xff]
            %65 = vst [vmem:[%s61 + $0x8] sm:$0xff] %v64
            %v66 = vld [vmem:[%s60 + $0x10] sm:$0xff]
            %67 = vst [vmem:[%s61 + $0x10] sm:$0xff] %v66
            %v68 = vld [vmem:[%s60 + $0x18] sm:$0xff]
            %69 = vst [vmem:[%s61 + $0x18] sm:$0xff] %v68
            %v70 = vld [vmem:[%s60 + $0x20] sm:$0xff]
            %71 = vst [vmem:[%s61 + $0x20] sm:$0xff] %v70
            %v72 = vld [vmem:[%s60 + $0x28] sm:$0xff]
            %73 = vst [vmem:[%s61 + $0x28] sm:$0xff] %v72
            %v74 = vld [vmem:[%s60 + $0x30] sm:$0xff]
            %75 = vst [vmem:[%s61 + $0x30] sm:$0xff] %v74
            %v76 = vld [vmem:[%s60 + $0x38] sm:$0xff]
            %77 = vst [vmem:[%s61 + $0x38] sm:$0xff] %v76
            %v78 = vld [vmem:[%s60 + $0x40] sm:$0xff]
            %79 = vst [vmem:[%s61 + $0x40] sm:$0xff] %v78
            %v80 = vld [vmem:[%s60 + $0x48] sm:$0xff]
            %81 = vst [vmem:[%s61 + $0x48] sm:$0xff] %v80
            %v82 = vld [vmem:[%s60 + $0x50] sm:$0xff]
            %83 = vst [vmem:[%s61 + $0x50] sm:$0xff] %v82
            %v84 = vld [vmem:[%s60 + $0x58] sm:$0xff]
            %85 = vst [vmem:[%s61 + $0x58] sm:$0xff] %v84
            %v86 = vld [vmem:[%s60 + $0x60] sm:$0xff]
            %87 = vst [vmem:[%s61 + $0x60] sm:$0xff] %v86
            %v88 = vld [vmem:[%s60 + $0x68] sm:$0xff]
            %89 = vst [vmem:[%s61 + $0x68] sm:$0xff] %v88
            %v90 = vld [vmem:[%s60 + $0x70] sm:$0xff]
            %91 = vst [vmem:[%s61 + $0x70] sm:$0xff] %v90
            %v92 = vld [vmem:[%s60 + $0x78] sm:$0xff]
            %93 = vst [vmem:[%s61 + $0x78] sm:$0xff] %v92
          $region29: #{reverse.5} parent=23 // loop_footer
            %s59 = sadd.s32 1, %s55
          $region30: #{reverse.5} parent=23 // loop_footer_branch
            %54 = sbr.rel target = $region26
          $region31: #{reverse.5} parent=23 // loop_exit
            _
        $region24: #{reverse.5} parent=8 // pred_fallthru
          _
        // Predicated region
        $region32: #{reverse.5} parent=8 // pred_check
          _
        $region33: #{reverse.5} parent=8 // pred_check_branch
          %95 = sbr.rel target = $region35
        $region34: #{reverse.5} parent=8 // pred_region
          _
        $region35: #{reverse.5} parent=8 // pred_fallthru
          _
      $region9: #{reverse.5} parent=4 // pred_fallthru
        _
      // Predicated region
      $region10: #{reverse.5} parent=4 // pred_check
        _
      $region11: #{reverse.5} parent=4 // pred_check_branch
        %10 = sbr.rel target = $region13
      $region12: #{reverse.5} parent=4 // pred_region
        loop: start=0, step=1, limit=1
        $region14: #{reverse.5} parent=12 // loop_pre_header
          _
        $region15: #{reverse.5} parent=12 // loop_header
          %s13 = sphi 0, %s17
          %p14 = scmp.ge.s32.totalorder %s13, 1
          %s18 = sphi %s0, %s0
          %s19 = sphi [#allocation0], [#allocation0]
        $region16: #{reverse.5} parent=12 // loop_header_branch
          %16 = sbr.rel (%p14) target = $region20
        $region17: #{reverse.5} parent=12 // loop_body
          %v20 = vld [vmem:[%s18] sm:$0xff]
          %21 = vst [vmem:[%s19] sm:$0xff] %v20
          %v22 = vld [vmem:[%s18 + $0x8] sm:$0xff]
          %23 = vst [vmem:[%s19 + $0x8] sm:$0xff] %v22
          %v24 = vld [vmem:[%s18 + $0x10] sm:$0xff]
          %25 = vst [vmem:[%s19 + $0x10] sm:$0xff] %v24
          %v26 = vld [vmem:[%s18 + $0x18] sm:$0xff]
          %27 = vst [vmem:[%s19 + $0x18] sm:$0xff] %v26
          %v28 = vld [vmem:[%s18 + $0x20] sm:$0xff]
          %29 = vst [vmem:[%s19 + $0x20] sm:$0xff] %v28
          %v30 = vld [vmem:[%s18 + $0x28] sm:$0xff]
          %31 = vst [vmem:[%s19 + $0x28] sm:$0xff] %v30
          %v32 = vld [vmem:[%s18 + $0x30] sm:$0xff]
          %33 = vst [vmem:[%s19 + $0x30] sm:$0xff] %v32
          %v34 = vld [vmem:[%s18 + $0x38] sm:$0xff]
          %35 = vst [vmem:[%s19 + $0x38] sm:$0xff] %v34
          %v36 = vld [vmem:[%s18 + $0x40] sm:$0xff]
          %37 = vst [vmem:[%s19 + $0x40] sm:$0xff] %v36
          %v38 = vld [vmem:[%s18 + $0x48] sm:$0xff]
          %39 = vst [vmem:[%s19 + $0x48] sm:$0xff] %v38
          %v40 = vld [vmem:[%s18 + $0x50] sm:$0xff]
          %41 = vst [vmem:[%s19 + $0x50] sm:$0xff] %v40
          %v42 = vld [vmem:[%s18 + $0x58] sm:$0xff]
          %43 = vst [vmem:[%s19 + $0x58] sm:$0xff] %v42
          %v44 = vld [vmem:[%s18 + $0x60] sm:$0xff]
          %45 = vst [vmem:[%s19 + $0x60] sm:$0xff] %v44
          %v46 = vld [vmem:[%s18 + $0x68] sm:$0xff]
          %47 = vst [vmem:[%s19 + $0x68] sm:$0xff] %v46
          %v48 = vld [vmem:[%s18 + $0x70] sm:$0xff]
          %49 = vst [vmem:[%s19 + $0x70] sm:$0xff] %v48
          %v50 = vld [vmem:[%s18 + $0x78] sm:$0xff]
          %51 = vst [vmem:[%s19 + $0x78] sm:$0xff] %v50
        $region18: #{reverse.5} parent=12 // loop_footer
          %s17 = sadd.s32 1, %s13
        $region19: #{reverse.5} parent=12 // loop_footer_branch
          %12 = sbr.rel target = $region15
        $region20: #{reverse.5} parent=12 // loop_exit
          _
      $region13: #{reverse.5} parent=4 // pred_fallthru
        _
    $region5: #{reverse.5} parent=1 // pred_fallthru
      _
    %96 = vnop
    %v97 = vld [vmem:[#allocation0] sm:$0xff]
    %98 = vperm.xlu0 %4, %v97
    %v99 = vpop.permute.xlu0 %98
    %100 = vst [vmem:[#allocation1] sm:$0xff] %v99
    %s101 = scalar_lea.vmem [#allocation1], 8
    %s102 = scalar_lea.vmem [#allocation0], 8
    %v103 = vld [vmem:[%s102] sm:$0xff]
    %104 = vperm.xlu0 %4, %v103
    %v105 = vpop.permute.xlu0 %104
    %106 = vst [vmem:[%s101] sm:$0xff] %v105
    %s107 = scalar_lea.vmem [#allocation1], 16
    %s108 = scalar_lea.vmem [#allocation0], 16
    %v109 = vld [vmem:[%s108] sm:$0xff]
    %110 = vperm.xlu0 %4, %v109
    %v111 = vpop.permute.xlu0 %110
    %112 = vst [vmem:[%s107] sm:$0xff] %v111
    %s113 = scalar_lea.vmem %s107, 8 [#allocation1]
    %s114 = scalar_lea.vmem %s108, 8 [#allocation0]
    %v115 = vld [vmem:[%s114] sm:$0xff]
    %116 = vperm.xlu0 %4, %v115
    %v117 = vpop.permute.xlu0 %116
    %118 = vst [vmem:[%s113] sm:$0xff] %v117
    %s119 = scalar_lea.vmem [#allocation1], 32
    %s120 = scalar_lea.vmem [#allocation0], 32
    %v121 = vld [vmem:[%s120] sm:$0xff]
    %122 = vperm.xlu0 %4, %v121
    %v123 = vpop.permute.xlu0 %122
    %124 = vst [vmem:[%s119] sm:$0xff] %v123
    %s125 = scalar_lea.vmem %s119, 8 [#allocation1]
    %s126 = scalar_lea.vmem %s120, 8 [#allocation0]
    %v127 = vld [vmem:[%s126] sm:$0xff]
    %128 = vperm.xlu0 %4, %v127
    %v129 = vpop.permute.xlu0 %128
    %130 = vst [vmem:[%s125] sm:$0xff] %v129
    %s131 = scalar_lea.vmem [#allocation1], 48
    %s132 = scalar_lea.vmem [#allocation0], 48
    %v133 = vld [vmem:[%s132] sm:$0xff]
    %134 = vperm.xlu0 %4, %v133
    %v135 = vpop.permute.xlu0 %134
    %136 = vst [vmem:[%s131] sm:$0xff] %v135
    %s137 = scalar_lea.vmem %s131, 8 [#allocation1]
    %s138 = scalar_lea.vmem %s132, 8 [#allocation0]
    %v139 = vld [vmem:[%s138] sm:$0xff]
    %140 = vperm.xlu0 %4, %v139
    %v141 = vpop.permute.xlu0 %140
    %142 = vst [vmem:[%s137] sm:$0xff] %v141
    %s143 = scalar_lea.vmem [#allocation1], 64
    %s144 = scalar_lea.vmem [#allocation0], 64
    %v145 = vld [vmem:[%s144] sm:$0xff]
    %146 = vperm.xlu0 %4, %v145
    %v147 = vpop.permute.xlu0 %146
    %148 = vst [vmem:[%s143] sm:$0xff] %v147
    %s149 = scalar_lea.vmem %s143, 8 [#allocation1]
    %s150 = scalar_lea.vmem %s144, 8 [#allocation0]
    %v151 = vld [vmem:[%s150] sm:$0xff]
    %152 = vperm.xlu0 %4, %v151
    %v153 = vpop.permute.xlu0 %152
    %154 = vst [vmem:[%s149] sm:$0xff] %v153
    %s155 = scalar_lea.vmem [#allocation1], 80
    %s156 = scalar_lea.vmem [#allocation0], 80
    %v157 = vld [vmem:[%s156] sm:$0xff]
    %158 = vperm.xlu0 %4, %v157
    %v159 = vpop.permute.xlu0 %158
    %160 = vst [vmem:[%s155] sm:$0xff] %v159
    %s161 = scalar_lea.vmem %s155, 8 [#allocation1]
    %s162 = scalar_lea.vmem %s156, 8 [#allocation0]
    %v163 = vld [vmem:[%s162] sm:$0xff]
    %164 = vperm.xlu0 %4, %v163
    %v165 = vpop.permute.xlu0 %164
    %166 = vst [vmem:[%s161] sm:$0xff] %v165
    %s167 = scalar_lea.vmem [#allocation1], 96
    %s168 = scalar_lea.vmem [#allocation0], 96
    %v169 = vld [vmem:[%s168] sm:$0xff]
    %170 = vperm.xlu0 %4, %v169
    %v171 = vpop.permute.xlu0 %170
    %172 = vst [vmem:[%s167] sm:$0xff] %v171
    %s173 = scalar_lea.vmem %s167, 8 [#allocation1]
    %s174 = scalar_lea.vmem %s168, 8 [#allocation0]
    %v175 = vld [vmem:[%s174] sm:$0xff]
    %176 = vperm.xlu0 %4, %v175
    %v177 = vpop.permute.xlu0 %176
    %178 = vst [vmem:[%s173] sm:$0xff] %v177
    %s179 = scalar_lea.vmem [#allocation1], 112
    %s180 = scalar_lea.vmem [#allocation0], 112
    %v181 = vld [vmem:[%s180] sm:$0xff]
    %182 = vperm.xlu0 %4, %v181
    %v183 = vpop.permute.xlu0 %182
    %184 = vst [vmem:[%s179] sm:$0xff] %v183
    %s185 = scalar_lea.vmem %s179, 8 [#allocation1]
    %s186 = scalar_lea.vmem %s180, 8 [#allocation0]
    %v187 = vld [vmem:[%s186] sm:$0xff]
    %188 = vperm.xlu0 %4, %v187
    %v189 = vpop.permute.xlu0 %188
    %190 = vst [vmem:[%s185] sm:$0xff] %v189
    // Predicated region
    $region36: #{reverse.5} parent=1 // pred_check
      _
    $region37: #{reverse.5} parent=1 // pred_check_branch
      %192 = sbr.rel (0) target = $region39
    $region38: #{reverse.5} parent=1 // pred_region
      // Predicated region
      $region40: #{reverse.5} parent=38 // pred_check
        _
      $region41: #{reverse.5} parent=38 // pred_check_branch
        %194 = sbr.rel (0) target = $region43
      $region42: #{reverse.5} parent=38 // pred_region
        // Predicated region
        $region55: #{reverse.5} parent=42 // pred_check
          _
        $region56: #{reverse.5} parent=42 // pred_check_branch
          %239 = sbr.rel (0) target = $region58
        $region57: #{reverse.5} parent=42 // pred_region
          loop: start=0, step=1, limit=1
          $region59: #{reverse.5} parent=57 // loop_pre_header
            _
          $region60: #{reverse.5} parent=57 // loop_header
            %s241 = sphi 0, %s245
            %p242 = scmp.ge.s32.totalorder %s241, 1
            %s246 = sphi [#allocation1], [#allocation1]
            %s247 = sphi %s1, %s1
          $region61: #{reverse.5} parent=57 // loop_header_branch
            %244 = sbr.rel (%p242) target = $region65
          $region62: #{reverse.5} parent=57 // loop_body
            %v248 = vld [vmem:[%s246] sm:$0xff]
            %249 = vst [vmem:[%s247] sm:$0xff] %v248
            %v250 = vld [vmem:[%s246 + $0x8] sm:$0xff]
            %251 = vst [vmem:[%s247 + $0x8] sm:$0xff] %v250
            %v252 = vld [vmem:[%s246 + $0x10] sm:$0xff]
            %253 = vst [vmem:[%s247 + $0x10] sm:$0xff] %v252
            %v254 = vld [vmem:[%s246 + $0x18] sm:$0xff]
            %255 = vst [vmem:[%s247 + $0x18] sm:$0xff] %v254
            %v256 = vld [vmem:[%s246 + $0x20] sm:$0xff]
            %257 = vst [vmem:[%s247 + $0x20] sm:$0xff] %v256
            %v258 = vld [vmem:[%s246 + $0x28] sm:$0xff]
            %259 = vst [vmem:[%s247 + $0x28] sm:$0xff] %v258
            %v260 = vld [vmem:[%s246 + $0x30] sm:$0xff]
            %261 = vst [vmem:[%s247 + $0x30] sm:$0xff] %v260
            %v262 = vld [vmem:[%s246 + $0x38] sm:$0xff]
            %263 = vst [vmem:[%s247 + $0x38] sm:$0xff] %v262
            %v264 = vld [vmem:[%s246 + $0x40] sm:$0xff]
            %265 = vst [vmem:[%s247 + $0x40] sm:$0xff] %v264
            %v266 = vld [vmem:[%s246 + $0x48] sm:$0xff]
            %267 = vst [vmem:[%s247 + $0x48] sm:$0xff] %v266
            %v268 = vld [vmem:[%s246 + $0x50] sm:$0xff]
            %269 = vst [vmem:[%s247 + $0x50] sm:$0xff] %v268
            %v270 = vld [vmem:[%s246 + $0x58] sm:$0xff]
            %271 = vst [vmem:[%s247 + $0x58] sm:$0xff] %v270
            %v272 = vld [vmem:[%s246 + $0x60] sm:$0xff]
            %273 = vst [vmem:[%s247 + $0x60] sm:$0xff] %v272
            %v274 = vld [vmem:[%s246 + $0x68] sm:$0xff]
            %275 = vst [vmem:[%s247 + $0x68] sm:$0xff] %v274
            %v276 = vld [vmem:[%s246 + $0x70] sm:$0xff]
            %277 = vst [vmem:[%s247 + $0x70] sm:$0xff] %v276
            %v278 = vld [vmem:[%s246 + $0x78] sm:$0xff]
            %279 = vst [vmem:[%s247 + $0x78] sm:$0xff] %v278
          $region63: #{reverse.5} parent=57 // loop_footer
            %s245 = sadd.s32 1, %s241
          $region64: #{reverse.5} parent=57 // loop_footer_branch
            %240 = sbr.rel target = $region60
          $region65: #{reverse.5} parent=57 // loop_exit
            _
        $region58: #{reverse.5} parent=42 // pred_fallthru
          _
        // Predicated region
        $region66: #{reverse.5} parent=42 // pred_check
          _
        $region67: #{reverse.5} parent=42 // pred_check_branch
          %281 = sbr.rel target = $region69
        $region68: #{reverse.5} parent=42 // pred_region
          _
        $region69: #{reverse.5} parent=42 // pred_fallthru
          _
      $region43: #{reverse.5} parent=38 // pred_fallthru
        _
      // Predicated region
      $region44: #{reverse.5} parent=38 // pred_check
        _
      $region45: #{reverse.5} parent=38 // pred_check_branch
        %196 = sbr.rel target = $region47
      $region46: #{reverse.5} parent=38 // pred_region
        loop: start=0, step=1, limit=1
        $region48: #{reverse.5} parent=46 // loop_pre_header
          _
        $region49: #{reverse.5} parent=46 // loop_header
          %s199 = sphi 0, %s203
          %p200 = scmp.ge.s32.totalorder %s199, 1
          %s204 = sphi [#allocation1], [#allocation1]
          %s205 = sphi %s1, %s1
        $region50: #{reverse.5} parent=46 // loop_header_branch
          %202 = sbr.rel (%p200) target = $region54
        $region51: #{reverse.5} parent=46 // loop_body
          %v206 = vld [vmem:[%s204] sm:$0xff]
          %207 = vst [vmem:[%s205] sm:$0xff] %v206
          %v208 = vld [vmem:[%s204 + $0x8] sm:$0xff]
          %209 = vst [vmem:[%s205 + $0x8] sm:$0xff] %v208
          %v210 = vld [vmem:[%s204 + $0x10] sm:$0xff]
          %211 = vst [vmem:[%s205 + $0x10] sm:$0xff] %v210
          %v212 = vld [vmem:[%s204 + $0x18] sm:$0xff]
          %213 = vst [vmem:[%s205 + $0x18] sm:$0xff] %v212
          %v214 = vld [vmem:[%s204 + $0x20] sm:$0xff]
          %215 = vst [vmem:[%s205 + $0x20] sm:$0xff] %v214
          %v216 = vld [vmem:[%s204 + $0x28] sm:$0xff]
          %217 = vst [vmem:[%s205 + $0x28] sm:$0xff] %v216
          %v218 = vld [vmem:[%s204 + $0x30] sm:$0xff]
          %219 = vst [vmem:[%s205 + $0x30] sm:$0xff] %v218
          %v220 = vld [vmem:[%s204 + $0x38] sm:$0xff]
          %221 = vst [vmem:[%s205 + $0x38] sm:$0xff] %v220
          %v222 = vld [vmem:[%s204 + $0x40] sm:$0xff]
          %223 = vst [vmem:[%s205 + $0x40] sm:$0xff] %v222
          %v224 = vld [vmem:[%s204 + $0x48] sm:$0xff]
          %225 = vst [vmem:[%s205 + $0x48] sm:$0xff] %v224
          %v226 = vld [vmem:[%s204 + $0x50] sm:$0xff]
          %227 = vst [vmem:[%s205 + $0x50] sm:$0xff] %v226
          %v228 = vld [vmem:[%s204 + $0x58] sm:$0xff]
          %229 = vst [vmem:[%s205 + $0x58] sm:$0xff] %v228
          %v230 = vld [vmem:[%s204 + $0x60] sm:$0xff]
          %231 = vst [vmem:[%s205 + $0x60] sm:$0xff] %v230
          %v232 = vld [vmem:[%s204 + $0x68] sm:$0xff]
          %233 = vst [vmem:[%s205 + $0x68] sm:$0xff] %v232
          %v234 = vld [vmem:[%s204 + $0x70] sm:$0xff]
          %235 = vst [vmem:[%s205 + $0x70] sm:$0xff] %v234
          %v236 = vld [vmem:[%s204 + $0x78] sm:$0xff]
          %237 = vst [vmem:[%s205 + $0x78] sm:$0xff] %v236
        $region52: #{reverse.5} parent=46 // loop_footer
          %s203 = sadd.s32 1, %s199
        $region53: #{reverse.5} parent=46 // loop_footer_branch
          %198 = sbr.rel target = $region49
        $region54: #{reverse.5} parent=46 // loop_exit
          _
      $region47: #{reverse.5} parent=38 // pred_fallthru
        _
    $region39: #{reverse.5} parent=1 // pred_fallthru
      _
    %282 = vnop

// kernel: spectral_conv2d.1
$region0: #{spectral_conv2d.1}
  #allocation0 [shape = 'u32[]', space=smem, size = 0x4, offset = 0x4, fixed_abs, tag = 'smem constant byte address 0x4 - core index']
  #allocation1 [shape = 'u32[144,128]{1,0:T(1,128)}', space=vmem, size = 0x12000, scoped, tag = 'internal scratch']
  %s0 = inlined_call_operand.vmem [shape: f32[128,128], index: 0, kind: input, shape index: {}]
  %s1 = inlined_call_operand.vmem [shape: f32[128,128], index: 1, kind: input, shape index: {}]
  %s2 = inlined_call_operand.vmem [shape: f32[128,128], index: 2, kind: output, shape index: {}]
  %s3 = sld [smem:[#allocation0]]
  $region18: #{spectral_conv2d.1} parent=0
    _
  %s5 = ssub.s32 1, %s3
  %s6 = scalar_select 0, %s5, %s3
  // Predicated region
  $region2: #{spectral_conv2d.1} parent=0 // pred_check
    _
  $region3: #{spectral_conv2d.1} parent=0 // pred_check_branch
    %8 = sbr.rel (0) target = $region5
  $region4: #{spectral_conv2d.1} parent=0 // pred_region
    _
  $region5: #{spectral_conv2d.1} parent=0 // pred_fallthru
    _
  // Predicated region
  $region6: #{spectral_conv2d.1} parent=0 // pred_check
    _
  $region7: #{spectral_conv2d.1} parent=0 // pred_check_branch
    %10 = sbr.rel (0) target = $region9
  $region8: #{spectral_conv2d.1} parent=0 // pred_region
    _
  $region9: #{spectral_conv2d.1} parent=0 // pred_fallthru
    _
  %v11 = vld [vmem:[%s0] sm:$0xff]
  %v12 = vld [vmem:[%s0 + $0x8] sm:$0xff]
  %v13 = vld [vmem:[%s0 + $0x10] sm:$0xff]
  %v14 = vld [vmem:[%s0 + $0x18] sm:$0xff]
  %v15 = vld [vmem:[%s0 + $0x20] sm:$0xff]
  %v16 = vld [vmem:[%s0 + $0x28] sm:$0xff]
  %v17 = vld [vmem:[%s0 + $0x30] sm:$0xff]
  %v18 = vld [vmem:[%s0 + $0x38] sm:$0xff]
  %v19 = vld [vmem:[%s0 + $0x40] sm:$0xff]
  %v20 = vld [vmem:[%s0 + $0x48] sm:$0xff]
  %v21 = vld [vmem:[%s0 + $0x50] sm:$0xff]
  %v22 = vld [vmem:[%s0 + $0x58] sm:$0xff]
  %v23 = vld [vmem:[%s0 + $0x60] sm:$0xff]
  %v24 = vld [vmem:[%s0 + $0x68] sm:$0xff]
  %v25 = vld [vmem:[%s0 + $0x70] sm:$0xff]
  %v26 = vld [vmem:[%s0 + $0x78] sm:$0xff]
  %v27 = vld [vmem:[%s1] sm:$0xff]
  %v28 = vld [vmem:[%s1 + $0x8] sm:$0xff]
  %v29 = vld [vmem:[%s1 + $0x10] sm:$0xff]
  %v30 = vld [vmem:[%s1 + $0x18] sm:$0xff]
  %v31 = vld [vmem:[%s1 + $0x20] sm:$0xff]
  %v32 = vld [vmem:[%s1 + $0x28] sm:$0xff]
  %v33 = vld [vmem:[%s1 + $0x30] sm:$0xff]
  %v34 = vld [vmem:[%s1 + $0x38] sm:$0xff]
  %v35 = vld [vmem:[%s1 + $0x40] sm:$0xff]
  %v36 = vld [vmem:[%s1 + $0x48] sm:$0xff]
  %v37 = vld [vmem:[%s1 + $0x50] sm:$0xff]
  %v38 = vld [vmem:[%s1 + $0x58] sm:$0xff]
  %v39 = vld [vmem:[%s1 + $0x60] sm:$0xff]
  %v40 = vld [vmem:[%s1 + $0x68] sm:$0xff]
  %v41 = vld [vmem:[%s1 + $0x70] sm:$0xff]
  %v42 = vld [vmem:[%s1 + $0x78] sm:$0xff]
  %43 = vmatprep.subr.mxu0 0.0
  %44 = vmatpush1.msra.mxu0 %v27
  %45 = vmatprep.subr.mxu0 0.0
  %46 = vmatpush1.msra.mxu0 %v28
  %47 = vmatprep.subr.mxu0 0.0
  %48 = vmatpush1.msra.mxu0 %v29
  %49 = vmatprep.subr.mxu0 0.0
  %50 = vmatpush1.msra.mxu0 %v30
  %51 = vmatprep.subr.mxu0 0.0
  %52 = vmatpush1.msra.mxu0 %v31
  %53 = vmatprep.subr.mxu0 0.0
  %54 = vmatpush1.msra.mxu0 %v32
  %55 = vmatprep.subr.mxu0 0.0
  %56 = vmatpush1.msra.mxu0 %v33
  %57 = vmatprep.subr.mxu0 0.0
  %58 = vmatpush1.msra.mxu0 %v34
  %59 = vmatprep.subr.mxu0 0.0
  %60 = vmatpush1.msra.mxu0 %v35
  %61 = vmatprep.subr.mxu0 0.0
  %62 = vmatpush1.msra.mxu0 %v36
  %63 = vmatprep.subr.mxu0 0.0
  %64 = vmatpush1.msra.mxu0 %v37
  %65 = vmatprep.subr.mxu0 0.0
  %66 = vmatpush1.msra.mxu0 %v38
  %67 = vmatprep.subr.mxu0 0.0
  %68 = vmatpush1.msra.mxu0 %v39
  %69 = vmatprep.subr.mxu0 0.0
  %70 = vmatpush1.msra.mxu0 %v40
  %71 = vmatprep.subr.mxu0 0.0
  %72 = vmatpush1.msra.mxu0 %v41
  %73 = vmatprep.subr.mxu0 0.0
  %74 = vmatpush1.msra.mxu0 %v42
  %75 = vmatprep.subr.mxu0 0.0
  %76 = vmatpush1.msra.mxu0 0.0
  %77 = vmatprep.subr.mxu0 0.0
  %78 = vmatpush1.msra.mxu0 0.0
  %79 = vmatprep.subr.mxu0 0.0
  %80 = vmatpush1.msra.mxu0 0.0
  %81 = vmatprep.subr.mxu0 0.0
  %82 = vmatpush1.msra.mxu0 0.0
  %83 = vmatprep.subr.mxu0 0.0
  %84 = vmatpush1.msra.mxu0 0.0
  %85 = vmatprep.subr.mxu0 0.0
  %86 = vmatpush1.msra.mxu0 0.0
  %87 = vmatprep.subr.mxu0 0.0
  %88 = vmatpush1.msra.mxu0 0.0
  %89 = vmatprep.subr.mxu0 0.0
  %90 = vmatpush1.msra.mxu0 0.0
  %91 = vmatprep.subr.mxu0 0.0
  %92 = vmatpush1.msra.mxu0 0.0
  %93 = vmatprep.subr.mxu0 0.0
  %94 = vmatpush1.msra.mxu0 0.0
  %95 = vmatprep.subr.mxu0 0.0
  %96 = vmatpush1.msra.mxu0 0.0
  %97 = vmatprep.subr.mxu0 0.0
  %98 = vmatpush1.msra.mxu0 0.0
  %99 = vmatprep.subr.mxu0 0.0
  %100 = vmatpush1.msra.mxu0 0.0
  %101 = vmatprep.subr.mxu0 0.0
  %102 = vmatpush1.msra.mxu0 0.0
  %103 = vmatprep.subr.mxu0 0.0
  %104 = vmatpush1.msra.mxu0 0.0
  %105 = vmatprep.subr.mxu0 0.0
  %106 = vmatpush1.msra.mxu0 0.0
  %107 = vmatprep.mubr.f32.mxu0 0.0
  %108 = vmatmul.mubr.f32.gmra.mrb[0].mxu0 %v11
  %v109 = vpop.f32.mrb[0].mxu0
  %v110 = vadd.f32 0.0, %v109
  %v111 = vpop.f32.mrb[0].mxu0
  %112 = vmatprep.mubr.f32.mxu0 0.0
  %113 = vmatmul.mubr.f32.gmra.mrb[0].mxu0 %v12
  %v114 = vpop.f32.mrb[0].mxu0
  %v115 = vadd.f32 0.0, %v114
  %v116 = vpop.f32.mrb[0].mxu0
  %117 = vmatprep.mubr.f32.mxu0 0.0
  %118 = vmatmul.mubr.f32.gmra.mrb[0].mxu0 %v13
  %v119 = vpop.f32.mrb[0].mxu0
  %v120 = vadd.f32 0.0, %v119
  %v121 = vpop.f32.mrb[0].mxu0
  %122 = vmatprep.mubr.f32.mxu0 0.0
  %123 = vmatmul.mubr.f32.gmra.mrb[0].mxu0 %v14
  %v124 = vpop.f32.mrb[0].mxu0
  %v125 = vadd.f32 0.0, %v124
  %v126 = vpop.f32.mrb[0].mxu0
  %127 = vmatprep.mubr.f32.mxu0 0.0
  %128 = vmatmul.mubr.f32.gmra.mrb[0].mxu0 %v15
  %v129 = vpop.f32.mrb[0].mxu0
  %v130 = vadd.f32 0.0, %v129
  %v131 = vpop.f32.mrb[0].mxu0
  %132 = vmatprep.mubr.f32.mxu0 0.0
  %133 = vmatmul.mubr.f32.gmra.mrb[0].mxu0 %v16
  %v134 = vpop.f32.mrb[0].mxu0
  %v135 = vadd.f32 0.0, %v134
  %v136 = vpop.f32.mrb[0].mxu0
  %137 = vmatprep.mubr.f32.mxu0 0.0
  %138 = vmatmul.mubr.f32.gmra.mrb[0].mxu0 %v17
  %v139 = vpop.f32.mrb[0].mxu0
  %v140 = vadd.f32 0.0, %v139
  %v141 = vpop.f32.mrb[0].mxu0
  %142 = vmatprep.mubr.f32.mxu0 0.0
  %143 = vmatmul.mubr.f32.gmra.mrb[0].mxu0 %v18
  %v144 = vpop.f32.mrb[0].mxu0
  %v145 = vadd.f32 0.0, %v144
  %v146 = vpop.f32.mrb[0].mxu0
  %147 = vmatprep.mubr.f32.mxu0 0.0
  %148 = vmatmul.mubr.f32.gmra.mrb[0].mxu0 %v19
  %v149 = vpop.f32.mrb[0].mxu0
  %v150 = vadd.f32 0.0, %v149
  %v151 = vpop.f32.mrb[0].mxu0
  %152 = vmatprep.mubr.f32.mxu0 0.0
  %153 = vmatmul.mubr.f32.gmra.mrb[0].mxu0 %v20
  %v154 = vpop.f32.mrb[0].mxu0
  %v155 = vadd.f32 0.0, %v154
  %v156 = vpop.f32.mrb[0].mxu0
  %157 = vmatprep.mubr.f32.mxu0 0.0
  %158 = vmatmul.mubr.f32.gmra.mrb[0].mxu0 %v21
  %v159 = vpop.f32.mrb[0].mxu0
  %v160 = vadd.f32 0.0, %v159
  %v161 = vpop.f32.mrb[0].mxu0
  %162 = vmatprep.mubr.f32.mxu0 0.0
  %163 = vmatmul.mubr.f32.gmra.mrb[0].mxu0 %v22
  %v164 = vpop.f32.mrb[0].mxu0
  %v165 = vadd.f32 0.0, %v164
  %v166 = vpop.f32.mrb[0].mxu0
  %167 = vmatprep.mubr.f32.mxu0 0.0
  %168 = vmatmul.mubr.f32.gmra.mrb[0].mxu0 %v23
  %v169 = vpop.f32.mrb[0].mxu0
  %v170 = vadd.f32 0.0, %v169
  %v171 = vpop.f32.mrb[0].mxu0
  %172 = vmatprep.mubr.f32.mxu0 0.0
  %173 = vmatmul.mubr.f32.gmra.mrb[0].mxu0 %v24
  %v174 = vpop.f32.mrb[0].mxu0
  %v175 = vadd.f32 0.0, %v174
  %v176 = vpop.f32.mrb[0].mxu0
  %177 = vmatprep.mubr.f32.mxu0 0.0
  %178 = vmatmul.mubr.f32.gmra.mrb[0].mxu0 %v25
  %v179 = vpop.f32.mrb[0].mxu0
  %v180 = vadd.f32 0.0, %v179
  %v181 = vpop.f32.mrb[0].mxu0
  %182 = vmatprep.mubr.f32.mxu0 0.0
  %183 = vmatmul.mubr.f32.gmra.mrb[0].mxu0 %v26
  %v184 = vpop.f32.mrb[0].mxu0
  %v185 = vadd.f32 0.0, %v184
  %v186 = vpop.f32.mrb[0].mxu0
  %187 = vdwg.mxu0
  %188 = vst [vmem:[%s2] sm:$0xff] %v110
  %189 = vst [vmem:[%s2 + $0x8] sm:$0xff] %v115
  %190 = vst [vmem:[%s2 + $0x10] sm:$0xff] %v120
  %191 = vst [vmem:[%s2 + $0x18] sm:$0xff] %v125
  %192 = vst [vmem:[%s2 + $0x20] sm:$0xff] %v130
  %193 = vst [vmem:[%s2 + $0x28] sm:$0xff] %v135
  %194 = vst [vmem:[%s2 + $0x30] sm:$0xff] %v140
  %195 = vst [vmem:[%s2 + $0x38] sm:$0xff] %v145
  %196 = vst [vmem:[%s2 + $0x40] sm:$0xff] %v150
  %197 = vst [vmem:[%s2 + $0x48] sm:$0xff] %v155
  %198 = vst [vmem:[%s2 + $0x50] sm:$0xff] %v160
  %199 = vst [vmem:[%s2 + $0x58] sm:$0xff] %v165
  %200 = vst [vmem:[%s2 + $0x60] sm:$0xff] %v170
  %201 = vst [vmem:[%s2 + $0x68] sm:$0xff] %v175
  %202 = vst [vmem:[%s2 + $0x70] sm:$0xff] %v180
  %203 = vst [vmem:[%s2 + $0x78] sm:$0xff] %v185
  // Predicated region
  $region10: #{spectral_conv2d.1} parent=0 // pred_check
    _
  $region11: #{spectral_conv2d.1} parent=0 // pred_check_branch
    %205 = sbr.rel (0) target = $region13
  $region12: #{spectral_conv2d.1} parent=0 // pred_region
    _
  $region13: #{spectral_conv2d.1} parent=0 // pred_fallthru
    _
  // Predicated region
  $region14: #{spectral_conv2d.1} parent=0 // pred_check
    _
  $region15: #{spectral_conv2d.1} parent=0 // pred_check_branch
    %207 = sbr.rel (0) target = $region17
  $region16: #{spectral_conv2d.1} parent=0 // pred_region
    _
  $region17: #{spectral_conv2d.1} parent=0 // pred_fallthru
    _

</llo_original>
